<compile_context>
chip_gen: v5e
topology: v5e:2x2
jax: 0.10.0
libtpu: 0.0.40
codegen_flags: <defaults>
</compile_context>

<pallas_src>
import math

import jax
import jax.numpy as jnp
from jax.experimental import pallas as pl
from jax.experimental.pallas import tpu as pltpu

IN_FEATURES = 10
HIDDEN_FEATURES = 20
TN_MAX = 16384          # max lane-tile width for the output (nv*3) axis


def _round_up(x, m):
    return (x + m - 1) // m * m


# ----------------------------------------------------------------------------
# Pallas kernel: Linear(10->20) -> Dropout(identity) -> Linear(20->nv*3).
# Runs once per output tile j; layer 1 is tiny and recomputed per tile.
# ----------------------------------------------------------------------------
def fit_regressor_kernel(beta_ref, w1_ref, b1_ref, w2_ref, b2_ref, out_ref):
    # Linear(10 -> 20), f32.
    h = (jnp.dot(beta_ref[...], w1_ref[...], preferred_element_type=jnp.float32)
         + b1_ref[...])
    # Dropout(0.2) is the identity in eval mode (inference).
    # Linear(20 -> nv*3): bf16 weights on the MXU, f32 accumulation, f32 bias.
    out_ref[...] = (
        jnp.dot(h.astype(w2_ref.dtype), w2_ref[...],
                preferred_element_type=jnp.float32)
        + b2_ref[...]
    )


# ----------------------------------------------------------------------------
# One-time parameter preparation: pad to TPU-friendly shapes, cast w2 to bf16.
# ----------------------------------------------------------------------------
def prepare_params(params, tn_max=TN_MAX):
    I, H = params["w1"].shape          # (10, 20)
    H2, O = params["w2"].shape         # (20, nv*3)
    assert H == H2

    Ip = _round_up(I, 8)               # sublane-aligned contraction dim (f32)
    Hp = _round_up(H, 16)              # sublane-aligned for bf16 packing
    O_pad128 = _round_up(O, 128)
    TN = min(tn_max, O_pad128)         # lane tile (multiple of 128)
    Op = _round_up(O, TN)              # padded output dim, multiple of TN

    w1_p = jnp.zeros((Ip, Hp), jnp.float32).at[:I, :H].set(params["w1"])
    b1_p = jnp.zeros((1, Hp), jnp.float32).at[:, :H].set(params["b1"])
    w2_p = jnp.zeros((Hp, Op), jnp.bfloat16).at[:H, :O].set(
        params["w2"].astype(jnp.bfloat16))
    b2_p = jnp.zeros((1, Op), jnp.float32).at[:, :O].set(params["b2"])

    return {
        "w1": w1_p, "b1": b1_p, "w2": w2_p, "b2": b2_p,
        "I": I, "H": H, "O": O, "Ip": Ip, "Hp": Hp, "Op": Op, "TN": TN,
    }


# ----------------------------------------------------------------------------
# Per-call wrapper: pad beta, launch tiled pallas_call, strip padding.
# ----------------------------------------------------------------------------
def garment_fit_regressor_forward(beta, prep):
    """beta: (B, 10).  Returns disp of shape (B, nv, 3), like the torch module."""
    B, I = beta.shape
    Ip, Hp, Op, TN, O = prep["Ip"], prep["Hp"], prep["Op"], prep["TN"], prep["O"]
    Bp = _round_up(max(B, 8), 8)

    beta_p = jnp.zeros((Bp, Ip), jnp.float32).at[:B, :I].set(
        beta.astype(jnp.float32))

    grid = (Op // TN,)

    out_p = pl.pallas_call(
        fit_regressor_kernel,
        out_shape=jax.ShapeDtypeStruct((Bp, Op), jnp.float32),
        grid_spec=pltpu.PrefetchScalarGridSpec(
            num_scalar_prefetch=0,
            grid=grid,
            in_specs=[
                pl.BlockSpec((Bp, Ip), lambda j: (0, 0)),   # beta  (tiny, resident)
                pl.BlockSpec((Ip, Hp), lambda j: (0, 0)),   # w1    (tiny, resident)
                pl.BlockSpec((1, Hp), lambda j: (0, 0)),    # b1
                pl.BlockSpec((Hp, TN), lambda j: (0, j)),   # w2 tile (dominant DMA)
                pl.BlockSpec((1, TN), lambda j: (0, j)),    # b2 tile
            ],
            out_specs=pl.BlockSpec((Bp, TN), lambda j: (0, j)),
        ),
        compiler_params=pltpu.CompilerParams(
            dimension_semantics=("parallel",)),
    )(beta_p, prep["w1"], prep["b1"], prep["w2"], prep["b2"])

    disp = out_p[:B, :O]               # strip padding
    return disp.reshape(B, -1, 3)      # == disp.view(B, -1, 3) in torch


# ----------------------------------------------------------------------------
# Deterministic synthetic parameters (PyTorch-style uniform init, no file I/O).
# Weights stored transposed as (in_features, out_features), f32.
# ----------------------------------------------------------------------------
def init_params(key, nv):
    k1, k2, k3, k4 = jax.random.split(key, 4)
    bound1 = 1.0 / math.sqrt(IN_FEATURES)       # Linear(10, 20)
    bound2 = 1.0 / math.sqrt(HIDDEN_FEATURES)   # Linear(20, nv*3)
    out_dim = nv * 3

    def u(k_, shape, bound):
        return jax.random.uniform(k_, shape, jnp.float32, -bound, bound)

    return {
        "w1": u(k1, (IN_FEATURES, HIDDEN_FEATURES), bound1),
        "b1": u(k2, (1, HIDDEN_FEATURES), bound1),
        "w2": u(k3, (HIDDEN_FEATURES, out_dim), bound2),
        "b2": u(k4, (1, out_dim), bound2),
    }


# ----------------------------------------------------------------------------
# Pure-JAX reference (matches the kernel's bf16-w2 / f32-accumulation path).
# ----------------------------------------------------------------------------
def reference_forward(beta, params):
    h = beta @ params["w1"] + params["b1"]                       # Linear(10, 20)
    # Dropout = identity (eval).  Linear(20, nv*3) with bf16 weights, f32 acc.
    disp = jnp.dot(h.astype(jnp.bfloat16),
                   params["w2"].astype(jnp.bfloat16),
                   preferred_element_type=jnp.float32) + params["b2"]
    return disp.reshape(beta.shape[0], -1, 3)


if __name__ == "__main__":
    B = 2          # small batch
    nv = 16        # small number of garment vertices (output = nv*3)

    key = jax.random.PRNGKey(0)
    k_params, k_beta = jax.random.split(key, 2)

    params = init_params(k_params, nv)
    prep = prepare_params(params)          # one-time padding / bf16 cast
    beta = jax.random.normal(k_beta, (B, IN_FEATURES), jnp.float32)

    disp = garment_fit_regressor_forward(beta, prep)
    disp = jax.block_until_ready(disp)

    assert disp.shape == (B, nv, 3), disp.shape

    # Correctness check against a pure-JAX reference with matched precision.
    disp_ref = jax.block_until_ready(reference_forward(beta, params))
    err = float(jnp.max(jnp.abs(disp - disp_ref)))
    assert err < 5e-4, err

    print("KERNEL_OK")
</pallas_src>

<mosaic_0001>
module attributes {stable_mosaic.version = 11 : i64} {
  func.func @fit_regressor_kernel(%arg0: i32, %arg1: memref<8x16xf32, #tpu.memory_space<vmem>>, %arg2: memref<16x32xf32, #tpu.memory_space<vmem>>, %arg3: memref<1x32xf32, #tpu.memory_space<vmem>>, %arg4: memref<32x128xbf16, #tpu.memory_space<vmem>>, %arg5: memref<1x128xf32, #tpu.memory_space<vmem>>, %arg6: memref<8x128xf32, #tpu.memory_space<vmem>>) attributes {dimension_semantics = [#tpu.dimension_semantics<parallel>], iteration_bounds = array<i64: 1>, scalar_prefetch = 0 : i64, scratch_operands = 0 : i64, tpu.core_type = #tpu.core_type<tc>, window_params = [{pipeline_mode = #tpu.pipeline_mode<synchronous>, transform_indices = @transform_0, window_bounds = array<i64: 8, 16>}, {pipeline_mode = #tpu.pipeline_mode<synchronous>, transform_indices = @transform_1, window_bounds = array<i64: 16, 32>}, {pipeline_mode = #tpu.pipeline_mode<synchronous>, transform_indices = @transform_2, window_bounds = array<i64: 1, 32>}, {transform_indices = @transform_3, window_bounds = array<i64: 32, 128>}, {transform_indices = @transform_4, window_bounds = array<i64: 1, 128>}, {transform_indices = @transform_5, window_bounds = array<i64: 8, 128>}]} {
    %c0 = arith.constant 0 : index
    %c0_0 = arith.constant 0 : index
    %0 = vector.load %arg1[%c0, %c0_0] : memref<8x16xf32, #tpu.memory_space<vmem>>, vector<8x16xf32>
    %c0_1 = arith.constant 0 : index
    %c0_2 = arith.constant 0 : index
    %1 = vector.load %arg2[%c0_1, %c0_2] : memref<16x32xf32, #tpu.memory_space<vmem>>, vector<16x32xf32>
    %cst = arith.constant dense<0.000000e+00> : vector<8x32xf32>
    %2 = tpu.matmul %0, %1, %cst {dimension_numbers = #tpu.dot_dimension_numbers<[1], [0], [0], [1], [0, 0, 1, 1], [], []>} : vector<8x16xf32>, vector<16x32xf32>, vector<8x32xf32> -> vector<8x32xf32>
    %c0_3 = arith.constant 0 : index
    %c0_4 = arith.constant 0 : index
    %3 = vector.load %arg3[%c0_3, %c0_4] : memref<1x32xf32, #tpu.memory_space<vmem>>, vector<1x32xf32>
    %4 = vector.broadcast %3 : vector<1x32xf32> to vector<8x32xf32>
    %5 = arith.addf %2, %4 : vector<8x32xf32>
    %6 = arith.truncf %5 : vector<8x32xf32> to vector<8x32xbf16>
    %c0_5 = arith.constant 0 : index
    %c0_6 = arith.constant 0 : index
    %7 = vector.load %arg4[%c0_5, %c0_6] : memref<32x128xbf16, #tpu.memory_space<vmem>>, vector<32x128xbf16>
    %cst_7 = arith.constant dense<0.000000e+00> : vector<8x128xf32>
    %8 = tpu.matmul %6, %7, %cst_7 {dimension_numbers = #tpu.dot_dimension_numbers<[1], [0], [0], [1], [0, 0, 1, 1], [], []>} : vector<8x32xbf16>, vector<32x128xbf16>, vector<8x128xf32> -> vector<8x128xf32>
    %c0_8 = arith.constant 0 : index
    %c0_9 = arith.constant 0 : index
    %9 = vector.load %arg5[%c0_8, %c0_9] : memref<1x128xf32, #tpu.memory_space<vmem>>, vector<1x128xf32>
    %10 = vector.broadcast %9 : vector<1x128xf32> to vector<8x128xf32>
    %11 = arith.addf %8, %10 : vector<8x128xf32>
    %c0_10 = arith.constant 0 : index
    %c0_11 = arith.constant 0 : index
    %12 = vector.load %arg6[%c0_10, %c0_11] : memref<8x128xf32, #tpu.memory_space<vmem>>, vector<8x128xf32>
    tpu.vector_store %arg6[%c0_10, %c0_11], %11 {strides = array<i32>} : memref<8x128xf32, #tpu.memory_space<vmem>>, vector<8x128xf32>,
    return
  }
  func.func @transform_0(%arg0: i32) -> (i32, i32) {
    %c0_i32 = arith.constant 0 : i32
    %c0_i32_0 = arith.constant 0 : i32
    %c0_i32_1 = arith.constant 0 : i32
    return %c0_i32, %c0_i32_0 : i32, i32
  }
  func.func @transform_1(%arg0: i32) -> (i32, i32) {
    %c0_i32 = arith.constant 0 : i32
    %c0_i32_0 = arith.constant 0 : i32
    %c0_i32_1 = arith.constant 0 : i32
    return %c0_i32, %c0_i32_0 : i32, i32
  }
  func.func @transform_2(%arg0: i32) -> (i32, i32) {
    %c0_i32 = arith.constant 0 : i32
    %c0_i32_0 = arith.constant 0 : i32
    %c0_i32_1 = arith.constant 0 : i32
    return %c0_i32, %c0_i32_0 : i32, i32
  }
  func.func @transform_3(%arg0: i32) -> (i32, i32) {
    %c0_i32 = arith.constant 0 : i32
    %c0_i32_0 = arith.constant 0 : i32
    return %c0_i32, %arg0 : i32, i32
  }
  func.func @transform_4(%arg0: i32) -> (i32, i32) {
    %c0_i32 = arith.constant 0 : i32
    %c0_i32_0 = arith.constant 0 : i32
    return %c0_i32, %arg0 : i32, i32
  }
  func.func @transform_5(%arg0: i32) -> (i32, i32) {
    %c0_i32 = arith.constant 0 : i32
    %c0_i32_0 = arith.constant 0 : i32
    return %c0_i32, %arg0 : i32, i32
  }
}

</mosaic_0001>

<llo_original>
// kernel: tpu_custom_call.1
$region0: #{tpu_custom_call.1}
  #allocation0 [shape = 'u32[]', space=smem, size = 0x4, offset = 0x4, fixed_abs, tag = 'smem constant byte address 0x4 - core index']
  #allocation1 [shape = 'u32[72,128]{1,0:T(1,128)}', space=vmem, size = 0x9000, scoped, tag = 'internal scratch']
  %s0 = inlined_call_operand.hbm [shape: f32[8,16], index: 0, kind: input, shape index: {}]
  %s1 = inlined_call_operand.hbm [shape: f32[16,32], index: 1, kind: input, shape index: {}]
  %s2 = inlined_call_operand.vmem [shape: f32[1,32], index: 2, kind: input, shape index: {}]
  %s3 = inlined_call_operand.hbm [shape: bf16[32,128], index: 3, kind: input, shape index: {}]
  %s4 = inlined_call_operand.vmem [shape: f32[1,128], index: 4, kind: input, shape index: {}]
  %s5 = inlined_call_operand.hbm [shape: f32[8,128], index: 5, kind: output, shape index: {}]
  %s6 = sld [smem:[#allocation0]]
  $region42: #{tpu_custom_call.1} parent=0
    _
  %s8 = ssub.s32 1, %s6
  %s9 = scalar_select 0, %s8, %s6
  $region1: #{tpu_custom_call.1} parent=0
    #allocation2 [shape = 'u8[4096]{0}', space=vmem, size = 0x1000, scoped, tag = 'input window, operand 0, single buffered']
    #allocation3 [shape = 's32[1]{0}', space=sflag, size = 0x4, scoped, tag = 'scoped memory for tpu_custom_call.1']
    #allocation4 [shape = 's32[1]{0}', space=sflag, size = 0x4, scoped, tag = 'scoped memory for tpu_custom_call.1']
    #allocation5 [shape = 'u8[8192]{0}', space=vmem, size = 0x2000, scoped, tag = 'input window, operand 1, single buffered']
    #allocation6 [shape = 's32[1]{0}', space=sflag, size = 0x4, scoped, tag = 'scoped memory for tpu_custom_call.1']
    #allocation7 [shape = 'u8[8192]{0}', space=vmem, size = 0x2000, scoped, tag = 'input window, operand 3, single buffered']
    #allocation8 [shape = 'u8[4096]{0}', space=vmem, size = 0x1000, scoped, tag = 'output window, operand 0, single buffered']
    %10 = vsyncpa [#allocation3], 0
    %11 = vsyncpa [#allocation6], 0
    %12 = vsyncpa [#allocation4], 0
    // Predicated region
    $region2: #{tpu_custom_call.1} parent=1 // pred_check
      _
    $region3: #{tpu_custom_call.1} parent=1 // pred_check_branch
      %14 = sbr.rel (0) target = $region5
    $region4: #{tpu_custom_call.1} parent=1 // pred_region
      %16 = vsyncadd [#allocation3], 0
      %s18 = sshll.u32 %s0, 4
      %s19 = int_to_ptr.hbm [resolvable:$true] %s18
      %s20 = sshll.u32 [#allocation2], 4
      %s21 = int_to_ptr.vmem [resolvable:$true] %s20
      %23 = dma.hbm_to_vmem [thread:$0]  %s19, 128, %s21, [#allocation3]
    $region5: #{tpu_custom_call.1} parent=1 // pred_fallthru
      _
    // Predicated region
    $region6: #{tpu_custom_call.1} parent=1 // pred_check
      _
    $region7: #{tpu_custom_call.1} parent=1 // pred_check_branch
      %25 = sbr.rel (0) target = $region9
    $region8: #{tpu_custom_call.1} parent=1 // pred_region
      %27 = vsyncadd [#allocation6], 0
      %s28 = sshll.u32 %s1, 4
      %s29 = int_to_ptr.hbm [resolvable:$true] %s28
      %s30 = sshll.u32 [#allocation5], 4
      %s31 = int_to_ptr.vmem [resolvable:$true] %s30
      %36 = dma.hbm_to_vmem [thread:$0]  %s29, 256, %s31, [#allocation6], 128, 128, 8
    $region9: #{tpu_custom_call.1} parent=1 // pred_fallthru
      _
    // Predicated region
    $region10: #{tpu_custom_call.1} parent=1 // pred_check
      _
    $region11: #{tpu_custom_call.1} parent=1 // pred_check_branch
      %38 = sbr.rel (0) target = $region13
    $region12: #{tpu_custom_call.1} parent=1 // pred_region
      _
    $region13: #{tpu_custom_call.1} parent=1 // pred_fallthru
      _
    // Predicated region
    $region14: #{tpu_custom_call.1} parent=1 // pred_check
      _
    $region15: #{tpu_custom_call.1} parent=1 // pred_check_branch
      %40 = sbr.rel (0) target = $region17
    $region16: #{tpu_custom_call.1} parent=1 // pred_region
      %42 = vsyncadd [#allocation6], 0
      %s43 = sshll.u32 %s3, 4
      %s44 = int_to_ptr.hbm [resolvable:$true] %s43
      %s45 = sshll.u32 [#allocation7], 4
      %s46 = int_to_ptr.vmem [resolvable:$true] %s45
      %51 = dma.hbm_to_vmem [thread:$0]  %s44, 256, %s46, [#allocation6], 64, 64, 4
    $region17: #{tpu_custom_call.1} parent=1 // pred_fallthru
      _
    // Predicated region
    $region18: #{tpu_custom_call.1} parent=1 // pred_check
      _
    $region19: #{tpu_custom_call.1} parent=1 // pred_check_branch
      %53 = sbr.rel (0) target = $region21
    $region20: #{tpu_custom_call.1} parent=1 // pred_region
      _
    $region21: #{tpu_custom_call.1} parent=1 // pred_fallthru
      _
    // Predicated region
    $region22: #{tpu_custom_call.1} parent=1 // pred_check
      _
    $region23: #{tpu_custom_call.1} parent=1 // pred_check_branch
      %55 = sbr.rel (0) target = $region25
    $region24: #{tpu_custom_call.1} parent=1 // pred_region
      %57 = dma.done [#allocation3], 128
    $region25: #{tpu_custom_call.1} parent=1 // pred_fallthru
      _
    // Predicated region
    $region26: #{tpu_custom_call.1} parent=1 // pred_check
      _
    $region27: #{tpu_custom_call.1} parent=1 // pred_check_branch
      %59 = sbr.rel (0) target = $region29
    $region28: #{tpu_custom_call.1} parent=1 // pred_region
      %61 = dma.done [#allocation6], 256
    $region29: #{tpu_custom_call.1} parent=1 // pred_fallthru
      _
    // Predicated region
    $region30: #{tpu_custom_call.1} parent=1 // pred_check
      _
    $region31: #{tpu_custom_call.1} parent=1 // pred_check_branch
      %63 = sbr.rel (0) target = $region33
    $region32: #{tpu_custom_call.1} parent=1 // pred_region
      %65 = dma.done [#allocation6], 256
    $region33: #{tpu_custom_call.1} parent=1 // pred_fallthru
      _
    %v67 = vld [vmem:[#allocation2] sm:$0xff]
    %v68 = vld [vmem:[#allocation5] sm:$0xff]
    %v69 = vld [vmem:[#allocation5 + $0x8] sm:$0xff]
    %v70 = vld [vmem:[%s2] sm:$0x1]
    %v72 = vperm.slane %v70, 0
    %vm74 = vcmask 130048
    %v76 = vsel %vm74, %v67, 0
    %78 = vmatpush.msra.mxu0 0.0
    %79 = vmatpush.msra.mxu0 0.0
    %80 = vmatpush.msra.mxu0 0.0
    %81 = vmatpush.msra.mxu0 0.0
    %82 = vmatpush.msra.mxu0 0.0
    %83 = vmatpush.msra.mxu0 0.0
    %84 = vmatpush.msra.mxu0 0.0
    %85 = vmatpush.msra.mxu0 0.0
    %86 = vmatpush.msra.mxu0 0.0
    %87 = vmatpush.msra.mxu0 0.0
    %88 = vmatpush.msra.mxu0 0.0
    %89 = vmatpush.msra.mxu0 0.0
    %90 = vmatpush.msra.mxu0 0.0
    %91 = vmatpush.msra.mxu0 0.0
    %92 = vmatpush.msra.mxu0 %v69
    %93 = vmatpush.msra.mxu0 %v68
    %94 = vmatmul.f32.gmra.mxu0 %v76
    %v95 = vpop.f32.mrf.mxu0
    %v96 = vadd.f32 %v72, %v95
    %97 = vdwg.mxu0
    %v98 = vpack.c.bf16 %v96, %v96
    %v99 = vld [vmem:[#allocation7] sm:$0xf]
    %v100 = vld [vmem:[#allocation7 + $0x4] sm:$0xf]
    %v101 = vld [vmem:[#allocation7 + $0x8] sm:$0xf]
    %v102 = vld [vmem:[#allocation7 + $0xc] sm:$0xf]
    %v103 = vld [vmem:[%s4] sm:$0x1]
    %v105 = vperm.slane %v103, 0
    %v111 = vunpack.c.l.b16 %v99
    %v112 = vunpack.c.l.b16 %v100
    %v113 = vunpack.c.l.b16 %v101
    %v114 = vunpack.c.l.b16 %v102
    %v115 = vpack.c.b16 %v112, %v111
    %v116 = vpack.c.b16 %v114, %v113
    %vm119 = vcmask 261120
    %v121 = vsel %vm119, %v98, 0
    %123 = vmatpush.bf16.msra.mxu0 0
    %124 = vmatpush.bf16.msra.mxu0 0
    %125 = vmatpush.bf16.msra.mxu0 0
    %126 = vmatpush.bf16.msra.mxu0 0
    %127 = vmatpush.bf16.msra.mxu0 0
    %128 = vmatpush.bf16.msra.mxu0 0
    %129 = vmatpush.bf16.msra.mxu0 %v116
    %130 = vmatpush.bf16.msra.mxu0 %v115
    %131 = vmatmul.bf16.gmra.mxu0 %v121
    %v132 = vpop.f32.mrf.mxu0
    %v133 = vadd.f32 %v105, %v132
    %v134 = vpop.f32.mrf.mxu0
    %135 = vdwg.mxu0
    %136 = vst [vmem:[#allocation8] sm:$0xff] %v133
    // Predicated region
    $region34: #{tpu_custom_call.1} parent=1 // pred_check
      _
    $region35: #{tpu_custom_call.1} parent=1 // pred_check_branch
      %138 = sbr.rel (0) target = $region37
    $region36: #{tpu_custom_call.1} parent=1 // pred_region
      %140 = vsyncadd [#allocation4], 0
      %s142 = sshll.u32 [#allocation8], 4
      %s143 = int_to_ptr.vmem [resolvable:$true] %s142
      %s144 = sshll.u32 %s5, 4
      %s145 = int_to_ptr.hbm [resolvable:$true] %s144
      %147 = dma.vmem_to_hbm [thread:$0]  %s143, 128, %s145, [#allocation4]
    $region37: #{tpu_custom_call.1} parent=1 // pred_fallthru
      _
    // Predicated region
    $region38: #{tpu_custom_call.1} parent=1 // pred_check
      _
    $region39: #{tpu_custom_call.1} parent=1 // pred_check_branch
      %149 = sbr.rel (0) target = $region41
    $region40: #{tpu_custom_call.1} parent=1 // pred_region
      %151 = dma.done [#allocation4], 128
    $region41: #{tpu_custom_call.1} parent=1 // pred_fallthru
      _
    %152 = vsyncpa [#allocation3], 1
    %153 = vsyncpa [#allocation6], 1
    %154 = vsyncpa [#allocation4], 1

</llo_original>
